<compile_context>
chip_gen: v6e
topology: v6e:2x2x1
jax: 0.10.0
libtpu: 0.0.40
codegen_flags: <defaults>
</compile_context>

<pallas_src>
import functools

import jax
import jax.numpy as jnp
from jax import lax
from jax.experimental import pallas as pl
from jax.experimental.pallas import tpu as pltpu

_LANES = 128
_SUBLANES = 8
_LOG2_E = 1.4426950408889634


def _round_up(x, m):
    return ((x + m - 1) // m) * m


def _static_power(x, c):
    """x ** c with a statically-known exponent; integer c -> repeated squaring (VPU muls)."""
    if float(c).is_integer() and c >= 0:
        n = int(c)
        if n == 0:
            return jnp.ones_like(x)
        result = None
        base = x
        while n:
            if n & 1:
                result = base if result is None else result * base
            n >>= 1
            if n:
                base = base * base
        return result
    return x ** c  # TODO(synk): non-integer c falls back to exp(c*log(x)) (3 EUP ops)


def _num_tensorcores():
    """2 on v7x (two TensorCores per chip), else 1.  Safe fallback to 1."""
    try:
        kind = jax.devices()[0].device_kind.lower()
    except Exception:
        return 1
    return 2 if "v7" in kind else 1


def _expw_msae_kernel(yp_ref, yt_ref, o_ref, *, b_log2e, c, mse_w, mae_w,
                      sub_rows, tr, steps, n_valid, need_mask):
    """Accumulate fused weighted (mse + mae) partial sums into an (8,128) block.

    Grid = (num_splits, steps).  o_ref is the per-split (8,128) f32 accumulator,
    resident across the reduction axis (axis 1).
    """
    p = pl.program_id(0)
    i = pl.program_id(1)

    @pl.when(i == 0)
    def _():
        o_ref[...] = jnp.zeros_like(o_ref)

    def accumulate(mask):
        yp = yp_ref[...].astype(jnp.float32)
        yt = yt_ref[...].astype(jnp.float32)
        if mask is not None:
            # Mask BEFORE any arithmetic: out-of-bounds block padding is garbage
            # bits and could be NaN/Inf.
            yp = jnp.where(mask, yp, 0.0)
            yt = jnp.where(mask, yt, 0.0)
        yt = jnp.clip(yt, 0.0, 1.0)
        # w = exp(b * yt**c) == exp2((b*log2(e)) * yt**c): single EUP exp2,
        # powers done on the VPU via repeated squaring.
        w = jnp.exp2(b_log2e * _static_power(yt, c))
        ad = jnp.abs(yp - yt)
        # w*(mse_w*d^2 + mae_w*|d|) == w * |d| * (mse_w*|d| + mae_w)
        inner = ad if mse_w == 1.0 else ad * mse_w
        if mae_w != 0.0:
            inner = inner + mae_w
        term = (w * ad) * inner
        # Partial-reduce the (tr, 128) tile to (8, 128) with VPU adds only.
        o_ref[...] += term.reshape(sub_rows, _SUBLANES, _LANES).sum(axis=0)

    if need_mask:
        gb = p * steps + i                 # global (unclamped) block index
        first = gb * (tr * _LANES)         # flat element index of block start
        block_full = first + tr * _LANES <= n_valid

        @pl.when(block_full)
        def _():
            accumulate(None)

        @pl.when(jnp.logical_not(block_full))
        def _():
            eidx = (first
                    + lax.broadcasted_iota(jnp.int32, (tr, _LANES), 0) * _LANES
                    + lax.broadcasted_iota(jnp.int32, (tr, _LANES), 1))
            accumulate(eidx < n_valid)
    else:
        accumulate(None)


def exp_weighted_msae_loss(y_pre, y_true, b=5.0, c=4.0, mse_w=1.0, mae_w=1.0,
                           max_tile_rows=4096, num_splits=None):
    """Scalar ExpWeightedMSAELoss over arbitrarily-shaped (4D/5D/...) inputs."""
    assert y_pre.shape == y_true.shape
    n_elems = int(y_pre.size)
    assert n_elems > 0

    if num_splits is None:
        num_splits = _num_tensorcores()
    num_splits = max(1, int(num_splits))

    # Keep native dtype (bf16 halves DMA bytes); the kernel upcasts to f32.
    if y_pre.dtype == jnp.float64:
        y_pre = y_pre.astype(jnp.float32)
    if y_true.dtype == jnp.float64:
        y_true = y_true.astype(jnp.float32)

    # Sub-32-bit dtypes pack along sublanes: keep tile rows a multiple of 16
    # (bf16) / 32 (8-bit) instead of 8.
    min_item = min(jnp.dtype(y_pre.dtype).itemsize, jnp.dtype(y_true.dtype).itemsize)
    align = _SUBLANES * max(1, 4 // int(min_item))

    yp_flat = y_pre.reshape(-1)
    yt_flat = y_true.reshape(-1)

    rows = max(-(-n_elems // _LANES), align)   # ceil-div, at least one aligned tile-row group
    padded_elems = rows * _LANES
    if padded_elems != n_elems:
        # TODO(synk): this pad copies the inputs once; it is only hit when numel
        # is not a multiple of 128 (or numel < align*128).  All larger ragged
        # tails are handled copy-free by the in-kernel mask below.
        pad = padded_elems - n_elems
        yp_flat = jnp.concatenate([yp_flat, jnp.zeros((pad,), yp_flat.dtype)])
        yt_flat = jnp.concatenate([yt_flat, jnp.zeros((pad,), yt_flat.dtype)])

    yp2 = yp_flat.reshape(rows, _LANES)
    yt2 = yt_flat.reshape(rows, _LANES)

    # Tile rows: multiple of `align`, as large as VMEM comfortably allows,
    # never larger than one split's share (load balance) nor than the array.
    max_tr = max(align, (int(max_tile_rows) // align) * align)
    tr = min(max_tr,
             _round_up(-(-rows // num_splits), align),
             (rows // align) * align)
    tr = max(tr, align)

    total_blocks = -(-rows // tr)
    steps = -(-total_blocks // num_splits)
    covered_rows = num_splits * steps * tr

    # Zero padding is exact for c >= 0 (yt=0 -> finite w, d=0 -> 0 contribution);
    # for c < 0 the padded elements would give 0**c = inf, so mask them too.
    n_valid = rows * _LANES if float(c) >= 0 else n_elems
    need_mask = (covered_rows != rows) or (n_valid != rows * _LANES)

    if num_splits * steps == total_blocks:
        in_idx = lambda p, i: (p * steps + i, 0)
    else:
        # Extra (duplicate) blocks are clamped onto the last real block; their
        # contribution is fully masked out in the kernel.
        in_idx = lambda p, i: (jnp.minimum(p * steps + i, total_blocks - 1), 0)

    kernel = functools.partial(
        _expw_msae_kernel,
        b_log2e=float(b) * _LOG2_E, c=float(c),
        mse_w=float(mse_w), mae_w=float(mae_w),
        sub_rows=tr // _SUBLANES, tr=tr, steps=steps,
        n_valid=int(n_valid), need_mask=bool(need_mask),
    )

    # Leading split axis: shard onto both TensorCores on v7x; plain serial
    # ("parallel"/"arbitrary") everywhere else.
    if num_splits > 1 and num_splits == _num_tensorcores():
        split_sem = getattr(pltpu, "CORE_PARALLEL", "parallel")
        red_sem = getattr(pltpu, "ARBITRARY", "arbitrary")
    elif num_splits > 1:
        split_sem, red_sem = "parallel", "arbitrary"
    else:
        split_sem, red_sem = "arbitrary", "arbitrary"

    bytes_in = n_elems * (jnp.dtype(y_pre.dtype).itemsize
                          + jnp.dtype(y_true.dtype).itemsize)
    cost = pl.CostEstimate(
        flops=13 * n_elems,
        transcendentals=n_elems,
        bytes_accessed=bytes_in + num_splits * _SUBLANES * _LANES * 4,
    )

    partials = pl.pallas_call(
        kernel,
        out_shape=jax.ShapeDtypeStruct((num_splits * _SUBLANES, _LANES), jnp.float32),
        grid_spec=pltpu.PrefetchScalarGridSpec(
            num_scalar_prefetch=0,
            grid=(num_splits, steps),
            in_specs=[
                pl.BlockSpec((tr, _LANES), in_idx),
                pl.BlockSpec((tr, _LANES), in_idx),
            ],
            out_specs=pl.BlockSpec((_SUBLANES, _LANES), lambda p, i: (p, 0)),
        ),
        compiler_params=pltpu.CompilerParams(
            dimension_semantics=(split_sem, red_sem),
            vmem_limit_bytes=32 * 1024 * 1024,
        ),
        cost_estimate=cost,
    )(yp2, yt2)

    # Tiny final combine + normalization by the *true* element count.
    return jnp.sum(partials) / n_elems


def _reference(y_pre, y_true, b=5.0, c=4.0, mse_w=1.0, mae_w=1.0):
    yt = jnp.clip(y_true.astype(jnp.float32), 0.0, 1.0)
    yp = y_pre.astype(jnp.float32)
    w = jnp.exp(b * yt ** c)
    d = yp - yt
    return mse_w * jnp.mean(d * d * w) + mae_w * jnp.mean(jnp.abs(d) * w)


if __name__ == "__main__":
    key = jax.random.PRNGKey(0)
    k1, k2, k3, k4, k5, k6 = jax.random.split(key, 6)

    # 4D NCHW input, numel multiple of 8*128 -> zero-copy, unmasked fast path.
    shape4 = (2, 4, 16, 16)
    y_pre4 = jax.random.normal(k1, shape4, dtype=jnp.float32) * 0.5 + 0.5
    y_true4 = jax.random.normal(k2, shape4, dtype=jnp.float32) * 0.8 + 0.5
    loss4 = jax.block_until_ready(exp_weighted_msae_loss(y_pre4, y_true4))
    ref4 = _reference(y_pre4, y_true4)
    assert jnp.allclose(loss4, ref4, rtol=1e-5, atol=1e-5), (loss4, ref4)

    # 5D input whose numel is NOT a multiple of 128 (small zero-pad path).
    shape5 = (1, 2, 3, 10, 11)
    y_pre5 = jax.random.normal(k3, shape5, dtype=jnp.float32) * 0.5 + 0.5
    y_true5 = jax.random.normal(k4, shape5, dtype=jnp.float32) * 0.8 + 0.5
    loss5 = jax.block_until_ready(exp_weighted_msae_loss(y_pre5, y_true5))
    ref5 = _reference(y_pre5, y_true5)
    assert jnp.allclose(loss5, ref5, rtol=1e-5, atol=1e-5), (loss5, ref5)

    # Ragged rows vs. tile + forced 2-way split: exercises the in-kernel mask
    # and the clamped duplicate-block index_map (serial on 1-TC chips).
    shape3 = (5, 8, 128)   # rows = 40, tile forced to 16 -> uneven blocks
    y_pre3 = jax.random.normal(k5, shape3, dtype=jnp.float32) * 0.5 + 0.5
    y_true3 = jax.random.normal(k6, shape3, dtype=jnp.float32) * 0.8 + 0.5
    loss3 = jax.block_until_ready(
        exp_weighted_msae_loss(y_pre3, y_true3, max_tile_rows=16, num_splits=2))
    ref3 = _reference(y_pre3, y_true3)
    assert jnp.allclose(loss3, ref3, rtol=1e-5, atol=1e-5), (loss3, ref3)

    # bf16 fast path (native-dtype DMA, f32 compute in-kernel).
    y_pre_b = y_pre4.astype(jnp.bfloat16)
    y_true_b = y_true4.astype(jnp.bfloat16)
    loss_b = jax.block_until_ready(exp_weighted_msae_loss(y_pre_b, y_true_b))
    ref_b = _reference(y_pre_b, y_true_b)
    assert jnp.allclose(loss_b, ref_b, rtol=1e-4, atol=1e-4), (loss_b, ref_b)

    print("KERNEL_OK")
</pallas_src>

<mosaic_0001>
module attributes {stable_mosaic.version = 11 : i64} {
  func.func @_expw_msae_kernel(%arg0: i32, %arg1: i32, %arg2: memref<16x128xf32, #tpu.memory_space<vmem>>, %arg3: memref<16x128xf32, #tpu.memory_space<vmem>>, %arg4: memref<8x128xf32, #tpu.memory_space<vmem>>) attributes {dimension_semantics = [#tpu.dimension_semantics<arbitrary>, #tpu.dimension_semantics<arbitrary>], iteration_bounds = array<i64: 1, 1>, scalar_prefetch = 0 : i64, scratch_operands = 0 : i64, tpu.core_type = #tpu.core_type<tc>, window_params = [{transform_indices = @transform_0, window_bounds = array<i64: 16, 128>}, {transform_indices = @transform_1, window_bounds = array<i64: 16, 128>}, {transform_indices = @transform_2, window_bounds = array<i64: 8, 128>}]} {
    %c0_i32 = arith.constant 0 : i32
    %0 = arith.cmpi eq, %arg1, %c0_i32 : i32
    %1 = arith.extui %0 : i1 to i32
    %c0_i32_0 = arith.constant 0 : i32
    %2 = arith.cmpi ne, %1, %c0_i32_0 : i32
    scf.if %2 {
      %cst_12 = arith.constant 0.000000e+00 : f32
      %25 = vector.broadcast %cst_12 : f32 to vector<8x128xf32>
      %c0_13 = arith.constant 0 : index
      %c0_14 = arith.constant 0 : index
      %26 = vector.load %arg4[%c0_13, %c0_14] : memref<8x128xf32, #tpu.memory_space<vmem>>, vector<8x128xf32>
      tpu.vector_store %arg4[%c0_13, %c0_14], %25 {strides = array<i32>} : memref<8x128xf32, #tpu.memory_space<vmem>>, vector<8x128xf32>,
    } else {
    }
    %c0 = arith.constant 0 : index
    %c0_1 = arith.constant 0 : index
    %3 = vector.load %arg2[%c0, %c0_1] : memref<16x128xf32, #tpu.memory_space<vmem>>, vector<16x128xf32>
    %c0_2 = arith.constant 0 : index
    %c0_3 = arith.constant 0 : index
    %4 = vector.load %arg3[%c0_2, %c0_3] : memref<16x128xf32, #tpu.memory_space<vmem>>, vector<16x128xf32>
    %cst = arith.constant 0.000000e+00 : f32
    %cst_4 = arith.constant 1.000000e+00 : f32
    %5 = vector.broadcast %cst : f32 to vector<16x128xf32>
    %6 = arith.maximumf %5, %4 : vector<16x128xf32>
    %7 = vector.broadcast %cst_4 : f32 to vector<16x128xf32>
    %8 = arith.minimumf %7, %6 : vector<16x128xf32>
    %9 = arith.mulf %8, %8 : vector<16x128xf32>
    %10 = arith.mulf %9, %9 : vector<16x128xf32>
    %cst_5 = arith.constant 7.21347522 : f32
    %11 = vector.broadcast %cst_5 : f32 to vector<16x128xf32>
    %12 = arith.mulf %11, %10 : vector<16x128xf32>
    %13 = math.exp2 %12 : vector<16x128xf32>
    %14 = arith.subf %3, %8 : vector<16x128xf32>
    %15 = math.absf %14 : vector<16x128xf32>
    %cst_6 = arith.constant 1.000000e+00 : f32
    %16 = vector.broadcast %cst_6 : f32 to vector<16x128xf32>
    %17 = arith.addf %15, %16 : vector<16x128xf32>
    %18 = arith.mulf %13, %15 : vector<16x128xf32>
    %19 = arith.mulf %18, %17 : vector<16x128xf32>
    %c0_7 = arith.constant 0 : index
    %c0_8 = arith.constant 0 : index
    %20 = vector.load %arg4[%c0_7, %c0_8] : memref<8x128xf32, #tpu.memory_space<vmem>>, vector<8x128xf32>
    %21 = vector.shape_cast %19 : vector<16x128xf32> to vector<2x8x128xf32>
    %cst_9 = arith.constant dense<0.000000e+00> : vector<8x128xf32>
    %22 = vector.multi_reduction <add>, %21, %cst_9 [0] : vector<2x8x128xf32> to vector<8x128xf32>
    %23 = arith.addf %20, %22 : vector<8x128xf32>
    %c0_10 = arith.constant 0 : index
    %c0_11 = arith.constant 0 : index
    %24 = vector.load %arg4[%c0_10, %c0_11] : memref<8x128xf32, #tpu.memory_space<vmem>>, vector<8x128xf32>
    tpu.vector_store %arg4[%c0_10, %c0_11], %23 {strides = array<i32>} : memref<8x128xf32, #tpu.memory_space<vmem>>, vector<8x128xf32>,
    return
  }
  func.func @transform_0(%arg0: i32, %arg1: i32) -> (i32, i32) {
    %c1_i32 = arith.constant 1 : i32
    %0 = arith.muli %arg0, %c1_i32 : i32
    %1 = arith.addi %0, %arg1 : i32
    %c0_i32 = arith.constant 0 : i32
    %c0_i32_0 = arith.constant 0 : i32
    return %1, %c0_i32 : i32, i32
  }
  func.func @transform_1(%arg0: i32, %arg1: i32) -> (i32, i32) {
    %c1_i32 = arith.constant 1 : i32
    %0 = arith.muli %arg0, %c1_i32 : i32
    %1 = arith.addi %0, %arg1 : i32
    %c0_i32 = arith.constant 0 : i32
    %c0_i32_0 = arith.constant 0 : i32
    return %1, %c0_i32 : i32, i32
  }
  func.func @transform_2(%arg0: i32, %arg1: i32) -> (i32, i32) {
    %c0_i32 = arith.constant 0 : i32
    %c0_i32_0 = arith.constant 0 : i32
    return %arg0, %c0_i32 : i32, i32
  }
}

</mosaic_0001>

<llo_original>
// kernel: tpu_custom_call.1
$region0: #{tpu_custom_call.1}
  #allocation0 [shape = 'u32[]', space=smem, size = 0x4, offset = 0x4, fixed_abs, tag = 'smem constant byte address 0x4 - core index']
  #allocation1 [shape = 'u32[144,128]{1,0:T(1,128)}', space=vmem, size = 0x12000, scoped, tag = 'internal scratch']
  %s0 = inlined_call_operand.hbm [shape: f32[16,128], index: 0, kind: input, shape index: {}]
  %s1 = inlined_call_operand.hbm [shape: f32[16,128], index: 1, kind: input, shape index: {}]
  %s2 = inlined_call_operand.hbm [shape: f32[8,128], index: 2, kind: output, shape index: {}]
  %s3 = sld [smem:[#allocation0]]
  $region30: #{tpu_custom_call.1} parent=0
    _
  %s5 = ssub.s32 1, %s3
  %s6 = scalar_select 0, %s5, %s3
  $region1: #{tpu_custom_call.1} parent=0
    #allocation2 [shape = 'u8[8192]{0}', space=vmem, size = 0x2000, scoped, tag = 'input window, operand 0, single buffered']
    #allocation3 [shape = 's32[1]{0}', space=sflag, size = 0x4, scoped, tag = 'scoped memory for tpu_custom_call.1']
    #allocation4 [shape = 's32[1]{0}', space=sflag, size = 0x4, scoped, tag = 'scoped memory for tpu_custom_call.1']
    #allocation5 [shape = 'u8[8192]{0}', space=vmem, size = 0x2000, scoped, tag = 'input window, operand 1, single buffered']
    #allocation6 [shape = 's32[1]{0}', space=sflag, size = 0x4, scoped, tag = 'scoped memory for tpu_custom_call.1']
    #allocation7 [shape = 'u8[4096]{0}', space=vmem, size = 0x1000, scoped, tag = 'output window, operand 0, single buffered']
    %7 = vsyncpa [#allocation3], 0
    %8 = vsyncpa [#allocation6], 0
    %9 = vsyncpa [#allocation4], 0
    // Predicated region
    $region2: #{tpu_custom_call.1} parent=1 // pred_check
      _
    $region3: #{tpu_custom_call.1} parent=1 // pred_check_branch
      %11 = sbr.rel (0) target = $region5
    $region4: #{tpu_custom_call.1} parent=1 // pred_region
      %s12 = sadd.s32 0, 0
      %s13 = smul.u32 2, %s12
      %s15 = ssub.s32 256, 256
      %16 = vsyncadd [#allocation3], %s15
      %s17 = smul.addr %s13, 128
      %s18 = scalar_lea.hbm %s0, %s17
      %s19 = sshll.u32 [#allocation2], 4
      %s20 = int_to_ptr.vmem [resolvable:$true] %s19
      %25 = dma.hbm_to_vmem [thread:$0]  %s18, 256, %s20, [#allocation3], 128, 128, 8
    $region5: #{tpu_custom_call.1} parent=1 // pred_fallthru
      _
    // Predicated region
    $region6: #{tpu_custom_call.1} parent=1 // pred_check
      _
    $region7: #{tpu_custom_call.1} parent=1 // pred_check_branch
      %27 = sbr.rel (0) target = $region9
    $region8: #{tpu_custom_call.1} parent=1 // pred_region
      %s28 = sadd.s32 0, 0
      %s29 = smul.u32 2, %s28
      %s31 = ssub.s32 256, 256
      %32 = vsyncadd [#allocation6], %s31
      %s33 = smul.addr %s29, 128
      %s34 = scalar_lea.hbm %s1, %s33
      %s35 = sshll.u32 [#allocation5], 4
      %s36 = int_to_ptr.vmem [resolvable:$true] %s35
      %41 = dma.hbm_to_vmem [thread:$0]  %s34, 256, %s36, [#allocation6], 128, 128, 8
    $region9: #{tpu_custom_call.1} parent=1 // pred_fallthru
      _
    // Predicated region
    $region10: #{tpu_custom_call.1} parent=1 // pred_check
      _
    $region11: #{tpu_custom_call.1} parent=1 // pred_check_branch
      %43 = sbr.rel (0) target = $region13
    $region12: #{tpu_custom_call.1} parent=1 // pred_region
      %44 = dma.done [#allocation3], 256
    $region13: #{tpu_custom_call.1} parent=1 // pred_fallthru
      _
    // Predicated region
    $region14: #{tpu_custom_call.1} parent=1 // pred_check
      _
    $region15: #{tpu_custom_call.1} parent=1 // pred_check_branch
      %46 = sbr.rel (0) target = $region17
    $region16: #{tpu_custom_call.1} parent=1 // pred_region
      %47 = dma.done [#allocation6], 256
    $region17: #{tpu_custom_call.1} parent=1 // pred_fallthru
      _
    %s48 = sadd.s32 0, 0
    %s49 = smul.u32 2, %s48
    %s50 = sadd.s32 0, 0
    %s51 = smul.u32 2, %s50
    %p52 = scmp.eq.s32.totalorder 0, 0
    // Predicated region
    $region18: #{tpu_custom_call.1} parent=1 // pred_check
      %p53 = pneg %p52
    $region19: #{tpu_custom_call.1} parent=1 // pred_check_branch
      %55 = sbr.rel (%p53) target = $region21
    $region20: #{tpu_custom_call.1} parent=1 // pred_region
      %56 = vst [vmem:[#allocation7] sm:$0xff] 0.0
    $region21: #{tpu_custom_call.1} parent=1 // pred_fallthru
      _
    %v57 = vld [vmem:[#allocation2] sm:$0xff]
    %v58 = vld [vmem:[#allocation2 + $0x8] sm:$0xff]
    %v59 = vld [vmem:[#allocation5] sm:$0xff]
    %v60 = vld [vmem:[#allocation5 + $0x8] sm:$0xff]
    %v61 = vmax.f32 %v59, 0.0
    %v62 = vmax.f32 %v60, 0.0
    %v63 = vmin.f32 %v61, 1.0
    %v64 = vmin.f32 %v62, 1.0
    %v65 = vmul.f32 %v63, %v63
    %v66 = vmul.f32 %v64, %v64
    %v67 = vmul.f32 %v65, %v65
    %v68 = vmul.f32 %v66, %v66
    %v69 = vmul.f32 %v67, 7.213475
    %v70 = vmul.f32 %v68, 7.213475
    %v71 = vpow.pop %v69
    %v72 = vpow.pop %v70
    %v73 = vsub.f32 %v57, %v63
    %v74 = vsub.f32 %v58, %v64
    %v75 = vand.u32 2147483647, %v73
    %v76 = vand.u32 2147483647, %v74
    %v77 = vadd.f32 %v75, 1.0
    %v78 = vadd.f32 %v76, 1.0
    %v79 = vmul.f32 %v71, %v75
    %v80 = vmul.f32 %v72, %v76
    %v81 = vmul.f32 %v79, %v77
    %v82 = vmul.f32 %v80, %v78
    %v83 = vld [vmem:[#allocation7] sm:$0xff]
    %v84 = vadd.f32 %v81, %v82
    %v85 = vadd.f32 %v83, %v84
    %86 = vst [vmem:[#allocation7] sm:$0xff] %v85
    // Predicated region
    $region22: #{tpu_custom_call.1} parent=1 // pred_check
      _
    $region23: #{tpu_custom_call.1} parent=1 // pred_check_branch
      %88 = sbr.rel (0) target = $region25
    $region24: #{tpu_custom_call.1} parent=1 // pred_region
      %s90 = ssub.s32 128, 128
      %91 = vsyncadd [#allocation4], %s90
      %s93 = sshll.u32 [#allocation7], 4
      %s94 = int_to_ptr.vmem [resolvable:$true] %s93
      %96 = dma.vmem_to_hbm [thread:$0]  %s94, 128, %s2, [#allocation4]
    $region25: #{tpu_custom_call.1} parent=1 // pred_fallthru
      _
    // Predicated region
    $region26: #{tpu_custom_call.1} parent=1 // pred_check
      _
    $region27: #{tpu_custom_call.1} parent=1 // pred_check_branch
      %98 = sbr.rel (0) target = $region29
    $region28: #{tpu_custom_call.1} parent=1 // pred_region
      %99 = dma.done [#allocation4], 128
    $region29: #{tpu_custom_call.1} parent=1 // pred_fallthru
      _
    %100 = vsyncpa [#allocation3], 1
    %101 = vsyncpa [#allocation6], 1
    %102 = vsyncpa [#allocation4], 1

</llo_original>
